<compile_context>
chip_gen: v7x
topology: tpu7x:2x2x1
jax: 0.10.0
libtpu: 0.0.40
codegen_flags: <defaults>
</compile_context>

<pallas_src>
import jax
import jax.numpy as jnp
from jax.experimental import pallas as pl
from jax.experimental.pallas import tpu as pltpu


def _round_up(n, m):
    return ((n + m - 1) // m) * m


def mlp_kernel(x_ref, w1_ref, b1_ref, w2_ref, b2_ref, w3_ref, b3_ref, o_ref):
    """Fused 3-layer MLP forward for one batch tile.

    Per grid step:
      x:  (TB, D_in)        compute dtype (f32 or bf16)
      w1: (D_in, H1)        b1: (1, H1)   f32
      w2: (H1,  H2)         b2: (1, H2)   f32
      w3: (1,  H2)  (row)   b3: (1, 1)    f32
      o:  (1, TB)           f32 (lane-dense output row)
    """
    cdt = w1_ref.dtype
    x = x_ref[...]

    # Layer 1: Linear + ReLU (MXU dot, f32 accumulate)
    h1 = jnp.dot(x, w1_ref[...], preferred_element_type=jnp.float32) + b1_ref[...]
    h1 = jnp.maximum(h1, 0.0)

    # Layer 2: Linear + ReLU
    h2 = jnp.dot(h1.astype(cdt), w2_ref[...],
                 preferred_element_type=jnp.float32) + b2_ref[...]
    h2 = jnp.maximum(h2, 0.0)                          # (TB, H2), f32

    # Output layer (H2 -> 1): VPU multiply + XLU transpose + cross-sublane
    # reduce instead of an MXU pass with one useful output column. The result
    # lands naturally in lane-major (1, TB) form for the lane-dense store.
    weighted = h2 * w3_ref[...]                        # (TB, H2) * (1, H2) -> VPU
    out_row = jnp.sum(jnp.transpose(weighted), axis=0, keepdims=True)  # (1, TB)
    out_row = out_row + b3_ref[...]                    # (1,1) broadcast

    o_ref[...] = out_row.astype(o_ref.dtype)


def _choose_tile(batch, block_b, min_grid_steps=2):
    """Pick the batch tile size TB.

    * Small batches: one full-extent block (always layout-legal).
    * Larger batches: biggest tile <= block_b, but with at least
      `min_grid_steps` grid steps (so v7x's two TensorCores both get work),
      rounded up to a multiple of 128 so the lane-dense (1, TB) output block
      satisfies the 128-lane divisibility rule when TB < B.
    """
    if batch <= 512:
        return batch
    tb = min(block_b, batch)
    tb = min(tb, -(-batch // min_grid_steps))   # ceil(batch / min_grid_steps)
    tb = _round_up(tb, 128)
    if tb >= batch:
        tb = batch
    return tb


def custom_dnn_forward(x, params, *, block_b=2048, compute_dtype=jnp.float32,
                       min_grid_steps=2, small_batch_threshold=256):
    """Run the fused MLP Pallas kernel with batch tiling.

    x: (B, D_in) float32
    params: dict with w1,b1,w2,b2,w3,b3 (weights (in,out), biases (1,out))
    block_b: max batch tile size (rows per grid step).
    compute_dtype: dtype for x / w1 / w2 operands (f32 or bf16); the MXU
      accumulates in f32 either way.
    small_batch_threshold: below this batch size, skip the Pallas call and
      use the plain fused-XLA path (pallas_call fixed cost dominates there).
    """
    B, d_in = x.shape
    h1 = params["w1"].shape[1]
    h2 = params["w2"].shape[1]
    d_out = params["w3"].shape[1]
    assert d_out == 1, "VPU-reduce output path assumes output_size == 1"

    if B <= small_batch_threshold:
        # Tiny batch: XLA's fused dots beat paying the kernel fixed costs.
        return reference_forward(x, params)

    TB = _choose_tile(B, block_b, min_grid_steps)
    grid = (pl.cdiv(B, TB),)

    x_c = x.astype(compute_dtype)
    w1_c = params["w1"].astype(compute_dtype)
    w2_c = params["w2"].astype(compute_dtype)
    w3_row = params["w3"].reshape(1, h2).astype(jnp.float32)  # (1, H2) row
    b1 = params["b1"].astype(jnp.float32)
    b2 = params["b2"].astype(jnp.float32)
    b3 = params["b3"].astype(jnp.float32)                     # (1, 1)

    itemsize = jnp.dtype(compute_dtype).itemsize

    # VMEM budget: double-buffered (lane-padded) x tile + (sublane-padded)
    # lane-dense out tile, plus f32 activation temporaries and the resident
    # weights. Headroom x2, clamped to stay safe on v7x's 64 MiB physical VMEM.
    x_buf = TB * _round_up(d_in, 128) * itemsize
    out_buf = 8 * TB * 4
    act_bytes = TB * (_round_up(h1, 128) + 2 * _round_up(h2, 128)) * 4
    w_bytes = 4 * (d_in * _round_up(h1, 128) + h1 * _round_up(h2, 128)
                   + 3 * 128) * 4
    vmem_est = 2 * (x_buf + out_buf) + act_bytes + w_bytes
    vmem_limit = int(min(max(2 * vmem_est, 16 * 2**20), 48 * 2**20))

    flops = 2 * B * (d_in * h1 + h1 * h2 + h2 * d_out)
    bytes_accessed = (
        B * d_in * itemsize + B * d_out * 4
        + (d_in * h1 + h1 * h2) * itemsize
        + (h1 + h2 + h2 * d_out + d_out) * 4
    )
    cost = pl.CostEstimate(flops=flops, transcendentals=0,
                           bytes_accessed=bytes_accessed)

    batch_map = lambda i: (i, 0)    # x streams along batch (sublane axis)
    out_map = lambda i: (0, i)      # out streams along batch (lane axis)
    resident = lambda i: (0, 0)     # constant block index -> stays VMEM-resident

    out_row_major = pl.pallas_call(
        mlp_kernel,
        out_shape=jax.ShapeDtypeStruct((1, B), jnp.float32),
        grid=grid,
        in_specs=[
            # NOTE: if profiling on v7x shows the x DMA exposed, add
            # pipeline_mode=pl.Buffered(3) to this BlockSpec.
            pl.BlockSpec((TB, d_in), batch_map),   # x   (tiled along batch)
            pl.BlockSpec((d_in, h1), resident),    # w1  (resident)
            pl.BlockSpec((1, h1), resident),       # b1
            pl.BlockSpec((h1, h2), resident),      # w2
            pl.BlockSpec((1, h2), resident),       # b2
            pl.BlockSpec((1, h2), resident),       # w3 row
            pl.BlockSpec((1, 1), resident),        # b3
        ],
        out_specs=pl.BlockSpec((1, TB), out_map),  # lane-dense output row block
        compiler_params=pltpu.CompilerParams(
            dimension_semantics=("parallel",),     # shard batch tiles across TCs
            vmem_limit_bytes=vmem_limit,
        ),
        cost_estimate=cost,
    )(x_c, w1_c, b1, w2_c, b2, w3_row, b3)

    # (1, B) row-major is the same element order as (B, 1): plain reshape.
    return out_row_major.reshape(B, d_out)


def init_params(key, input_size, hidden_layers, output_size):
    """Deterministic synthetic parameter init (shapes mirror nn.Linear layers)."""
    sizes = [input_size] + list(hidden_layers) + [output_size]
    params = {}
    keys = jax.random.split(key, len(sizes) - 1)
    for i, (d_in, d_out) in enumerate(zip(sizes[:-1], sizes[1:]), start=1):
        kw, kb = jax.random.split(keys[i - 1])
        bound = 1.0 / jnp.sqrt(d_in)
        # Stored as (in, out) so kernel computes x @ W + b (== PyTorch x @ W.T + b).
        params[f"w{i}"] = jax.random.uniform(
            kw, (d_in, d_out), jnp.float32, minval=-bound, maxval=bound)
        params[f"b{i}"] = jax.random.uniform(
            kb, (1, d_out), jnp.float32, minval=-bound, maxval=bound)
    return params


def reference_forward(x, params):
    """Pure-JAX reference (also used as the small-batch fast path)."""
    h = jnp.maximum(x @ params["w1"] + params["b1"], 0.0)
    h = jnp.maximum(h @ params["w2"] + params["b2"], 0.0)
    return h @ params["w3"] + params["b3"]


if __name__ == "__main__":
    # Module config: CustomDNN(input_size=32, hidden_layers=[64, 32],
    #                          dropout=0.0, output_size=1)
    input_size = 32
    hidden_layers = [64, 32]
    output_size = 1

    key = jax.random.PRNGKey(0)
    kx, kp, kb = jax.random.split(key, 3)
    params = init_params(kp, input_size, hidden_layers, output_size)

    # Small batch: single grid step, full-extent blocks (force the Pallas path).
    batch = 8
    x_small = jax.random.normal(kx, (batch, input_size), jnp.float32)
    out_s = jax.block_until_ready(
        custom_dnn_forward(x_small, params, small_batch_threshold=0))
    ref_s = reference_forward(x_small, params)
    assert out_s.shape == (batch, output_size), out_s.shape
    assert jnp.allclose(out_s, ref_s, atol=1e-5, rtol=1e-5), \
        "mismatch vs reference (small batch)"

    # Tiled batch: >=2 grid steps, masked partial last block, lane-dense output.
    big_batch = 640
    x_big = jax.random.normal(kb, (big_batch, input_size), jnp.float32)
    out_b = jax.block_until_ready(
        custom_dnn_forward(x_big, params, block_b=2048, small_batch_threshold=0))
    ref_b = reference_forward(x_big, params)
    assert out_b.shape == (big_batch, output_size), out_b.shape
    assert jnp.allclose(out_b, ref_b, atol=1e-5, rtol=1e-5), \
        "mismatch vs reference (tiled batch)"

    # bf16 operand path (halves x HBM traffic, f32 accumulation) — loose tol.
    out_bf16 = jax.block_until_ready(
        custom_dnn_forward(x_big, params, compute_dtype=jnp.bfloat16,
                           small_batch_threshold=0))
    assert out_bf16.shape == (big_batch, output_size), out_bf16.shape
    assert jnp.allclose(out_bf16, ref_b, atol=1e-1, rtol=5e-2), \
        "mismatch vs reference (bf16 operands)"

    print("KERNEL_OK")
</pallas_src>

<mosaic_0001>
module attributes {stable_mosaic.version = 11 : i64} {
  func.func @mlp_kernel(%arg0: i32, %arg1: memref<8x32xf32, #tpu.memory_space<vmem>>, %arg2: memref<32x64xf32, #tpu.memory_space<vmem>>, %arg3: memref<1x64xf32, #tpu.memory_space<vmem>>, %arg4: memref<64x32xf32, #tpu.memory_space<vmem>>, %arg5: memref<1x32xf32, #tpu.memory_space<vmem>>, %arg6: memref<1x32xf32, #tpu.memory_space<vmem>>, %arg7: memref<1x1xf32, #tpu.memory_space<vmem>>, %arg8: memref<1x8xf32, #tpu.memory_space<vmem>>) attributes {dimension_semantics = [#tpu.dimension_semantics<parallel>], iteration_bounds = array<i64: 1>, scalar_prefetch = 0 : i64, scratch_operands = 0 : i64, tpu.core_type = #tpu.core_type<tc>, window_params = [{transform_indices = @transform_0, window_bounds = array<i64: 8, 32>}, {pipeline_mode = #tpu.pipeline_mode<synchronous>, transform_indices = @transform_1, window_bounds = array<i64: 32, 64>}, {pipeline_mode = #tpu.pipeline_mode<synchronous>, transform_indices = @transform_2, window_bounds = array<i64: 1, 64>}, {pipeline_mode = #tpu.pipeline_mode<synchronous>, transform_indices = @transform_3, window_bounds = array<i64: 64, 32>}, {pipeline_mode = #tpu.pipeline_mode<synchronous>, transform_indices = @transform_4, window_bounds = array<i64: 1, 32>}, {pipeline_mode = #tpu.pipeline_mode<synchronous>, transform_indices = @transform_5, window_bounds = array<i64: 1, 32>}, {pipeline_mode = #tpu.pipeline_mode<synchronous>, transform_indices = @transform_6, window_bounds = array<i64: 1, 1>}, {transform_indices = @transform_7, window_bounds = array<i64: 1, 8>}]} {
    %c0 = arith.constant 0 : index
    %c0_0 = arith.constant 0 : index
    %0 = vector.load %arg1[%c0, %c0_0] : memref<8x32xf32, #tpu.memory_space<vmem>>, vector<8x32xf32>
    %c0_1 = arith.constant 0 : index
    %c0_2 = arith.constant 0 : index
    %1 = vector.load %arg2[%c0_1, %c0_2] : memref<32x64xf32, #tpu.memory_space<vmem>>, vector<32x64xf32>
    %cst = arith.constant dense<0.000000e+00> : vector<8x64xf32>
    %2 = tpu.matmul %0, %1, %cst {dimension_numbers = #tpu.dot_dimension_numbers<[1], [0], [0], [1], [0, 0, 1, 1], [], []>} : vector<8x32xf32>, vector<32x64xf32>, vector<8x64xf32> -> vector<8x64xf32>
    %c0_3 = arith.constant 0 : index
    %c0_4 = arith.constant 0 : index
    %3 = vector.load %arg3[%c0_3, %c0_4] : memref<1x64xf32, #tpu.memory_space<vmem>>, vector<1x64xf32>
    %4 = vector.broadcast %3 : vector<1x64xf32> to vector<8x64xf32>
    %5 = arith.addf %2, %4 : vector<8x64xf32>
    %cst_5 = arith.constant 0.000000e+00 : f32
    %6 = vector.broadcast %cst_5 : f32 to vector<8x64xf32>
    %7 = arith.maximumf %5, %6 : vector<8x64xf32>
    %c0_6 = arith.constant 0 : index
    %c0_7 = arith.constant 0 : index
    %8 = vector.load %arg4[%c0_6, %c0_7] : memref<64x32xf32, #tpu.memory_space<vmem>>, vector<64x32xf32>
    %cst_8 = arith.constant dense<0.000000e+00> : vector<8x32xf32>
    %9 = tpu.matmul %7, %8, %cst_8 {dimension_numbers = #tpu.dot_dimension_numbers<[1], [0], [0], [1], [0, 0, 1, 1], [], []>} : vector<8x64xf32>, vector<64x32xf32>, vector<8x32xf32> -> vector<8x32xf32>
    %c0_9 = arith.constant 0 : index
    %c0_10 = arith.constant 0 : index
    %10 = vector.load %arg5[%c0_9, %c0_10] : memref<1x32xf32, #tpu.memory_space<vmem>>, vector<1x32xf32>
    %11 = vector.broadcast %10 : vector<1x32xf32> to vector<8x32xf32>
    %12 = arith.addf %9, %11 : vector<8x32xf32>
    %cst_11 = arith.constant 0.000000e+00 : f32
    %13 = vector.broadcast %cst_11 : f32 to vector<8x32xf32>
    %14 = arith.maximumf %12, %13 : vector<8x32xf32>
    %c0_12 = arith.constant 0 : index
    %c0_13 = arith.constant 0 : index
    %15 = vector.load %arg6[%c0_12, %c0_13] : memref<1x32xf32, #tpu.memory_space<vmem>>, vector<1x32xf32>
    %16 = vector.broadcast %15 : vector<1x32xf32> to vector<8x32xf32>
    %17 = arith.mulf %14, %16 : vector<8x32xf32>
    %18 = tpu.transpose %17, [1, 0] : vector<8x32xf32> -> vector<32x8xf32>
    %cst_14 = arith.constant dense<0.000000e+00> : vector<8xf32>
    %19 = vector.multi_reduction <add>, %18, %cst_14 [0] : vector<32x8xf32> to vector<8xf32>
    %20 = vector.shape_cast %19 : vector<8xf32> to vector<1x8xf32>
    %c0_15 = arith.constant 0 : index
    %c0_16 = arith.constant 0 : index
    %21 = vector.load %arg7[%c0_15, %c0_16] : memref<1x1xf32, #tpu.memory_space<vmem>>, vector<1x1xf32>
    %22 = vector.broadcast %21 : vector<1x1xf32> to vector<1x8xf32>
    %23 = arith.addf %20, %22 : vector<1x8xf32>
    %c0_17 = arith.constant 0 : index
    %c0_18 = arith.constant 0 : index
    %24 = vector.load %arg8[%c0_17, %c0_18] : memref<1x8xf32, #tpu.memory_space<vmem>>, vector<1x8xf32>
    tpu.vector_store %arg8[%c0_17, %c0_18], %23 {strides = array<i32>} : memref<1x8xf32, #tpu.memory_space<vmem>>, vector<1x8xf32>,
    return
  }
  func.func @transform_0(%arg0: i32) -> (i32, i32) {
    %c0_i32 = arith.constant 0 : i32
    %c0_i32_0 = arith.constant 0 : i32
    return %arg0, %c0_i32 : i32, i32
  }
  func.func @transform_1(%arg0: i32) -> (i32, i32) {
    %c0_i32 = arith.constant 0 : i32
    %c0_i32_0 = arith.constant 0 : i32
    %c0_i32_1 = arith.constant 0 : i32
    return %c0_i32, %c0_i32_0 : i32, i32
  }
  func.func @transform_2(%arg0: i32) -> (i32, i32) {
    %c0_i32 = arith.constant 0 : i32
    %c0_i32_0 = arith.constant 0 : i32
    %c0_i32_1 = arith.constant 0 : i32
    return %c0_i32, %c0_i32_0 : i32, i32
  }
  func.func @transform_3(%arg0: i32) -> (i32, i32) {
    %c0_i32 = arith.constant 0 : i32
    %c0_i32_0 = arith.constant 0 : i32
    %c0_i32_1 = arith.constant 0 : i32
    return %c0_i32, %c0_i32_0 : i32, i32
  }
  func.func @transform_4(%arg0: i32) -> (i32, i32) {
    %c0_i32 = arith.constant 0 : i32
    %c0_i32_0 = arith.constant 0 : i32
    %c0_i32_1 = arith.constant 0 : i32
    return %c0_i32, %c0_i32_0 : i32, i32
  }
  func.func @transform_5(%arg0: i32) -> (i32, i32) {
    %c0_i32 = arith.constant 0 : i32
    %c0_i32_0 = arith.constant 0 : i32
    %c0_i32_1 = arith.constant 0 : i32
    return %c0_i32, %c0_i32_0 : i32, i32
  }
  func.func @transform_6(%arg0: i32) -> (i32, i32) {
    %c0_i32 = arith.constant 0 : i32
    %c0_i32_0 = arith.constant 0 : i32
    %c0_i32_1 = arith.constant 0 : i32
    return %c0_i32, %c0_i32_0 : i32, i32
  }
  func.func @transform_7(%arg0: i32) -> (i32, i32) {
    %c0_i32 = arith.constant 0 : i32
    %c0_i32_0 = arith.constant 0 : i32
    return %c0_i32, %arg0 : i32, i32
  }
}

</mosaic_0001>

<llo_original>
// kernel: tpu_custom_call.1
$region0: #{tpu_custom_call.1}
  #allocation0 [shape = 'u32[]', space=smem, size = 0x4, offset = 0x4, fixed_abs, tag = 'smem constant byte address 0x4 - core index']
  #allocation1 [shape = 'u32[144,128]{1,0:T(1,128)}', space=vmem, size = 0x12000, scoped, tag = 'internal scratch']
  #allocation2 [shape = 'f32[1,1]{1,0:T(1,128)S(1)}', space=vmem, size = 0x200, scoped, tag = 'scoped memory for tpu_custom_call.1']
  %s0 = inlined_call_operand.vmem [shape: f32[8,32], index: 0, kind: input, shape index: {}]
  %s1 = inlined_call_operand.vmem [shape: f32[32,64], index: 1, kind: input, shape index: {}]
  %s2 = inlined_call_operand.vmem [shape: f32[1,64], index: 2, kind: input, shape index: {}]
  %s3 = inlined_call_operand.vmem [shape: f32[64,32], index: 3, kind: input, shape index: {}]
  %s4 = inlined_call_operand.vmem [shape: f32[1,32], index: 4, kind: input, shape index: {}]
  %s5 = inlined_call_operand.vmem [shape: f32[1,32], index: 5, kind: input, shape index: {}]
  %s6 = inlined_call_operand.<no memory space> [shape: f32[1,1], index: 6, kind: input, shape index: {}]
  %s7 = inlined_call_operand.hbm [shape: f32[1,8], index: 7, kind: output, shape index: {}]
  %s8 = sld [smem:[#allocation0]]
  $region38: #{tpu_custom_call.1} parent=0
    _
  %s10 = ssub.s32 1, %s8
  %s11 = scalar_select 0, %s10, %s8
  %v12 = vstv %s6
  %13 = vst [vmem:[#allocation2] sm:$0x1] %v12
  $region1: #{tpu_custom_call.1} parent=0
    #allocation3 [shape = 'u8[512]{0}', space=vmem, size = 0x400, scoped, tag = 'output window, operand 0, single buffered']
    #allocation4 [shape = 's32[1]{0}', space=sflag, size = 0x4, scoped, tag = 'scoped memory for tpu_custom_call.1']
    %14 = vsyncpa [#allocation4], 0
    // Predicated region
    $region2: #{tpu_custom_call.1} parent=1 // pred_check
      _
    $region3: #{tpu_custom_call.1} parent=1 // pred_check_branch
      %16 = sbr.rel (0) target = $region5
    $region4: #{tpu_custom_call.1} parent=1 // pred_region
      _
    $region5: #{tpu_custom_call.1} parent=1 // pred_fallthru
      _
    // Predicated region
    $region6: #{tpu_custom_call.1} parent=1 // pred_check
      _
    $region7: #{tpu_custom_call.1} parent=1 // pred_check_branch
      %18 = sbr.rel (0) target = $region9
    $region8: #{tpu_custom_call.1} parent=1 // pred_region
      _
    $region9: #{tpu_custom_call.1} parent=1 // pred_fallthru
      _
    // Predicated region
    $region10: #{tpu_custom_call.1} parent=1 // pred_check
      _
    $region11: #{tpu_custom_call.1} parent=1 // pred_check_branch
      %20 = sbr.rel (0) target = $region13
    $region12: #{tpu_custom_call.1} parent=1 // pred_region
      _
    $region13: #{tpu_custom_call.1} parent=1 // pred_fallthru
      _
    // Predicated region
    $region14: #{tpu_custom_call.1} parent=1 // pred_check
      _
    $region15: #{tpu_custom_call.1} parent=1 // pred_check_branch
      %22 = sbr.rel (0) target = $region17
    $region16: #{tpu_custom_call.1} parent=1 // pred_region
      _
    $region17: #{tpu_custom_call.1} parent=1 // pred_fallthru
      _
    // Predicated region
    $region18: #{tpu_custom_call.1} parent=1 // pred_check
      _
    $region19: #{tpu_custom_call.1} parent=1 // pred_check_branch
      %24 = sbr.rel (0) target = $region21
    $region20: #{tpu_custom_call.1} parent=1 // pred_region
      _
    $region21: #{tpu_custom_call.1} parent=1 // pred_fallthru
      _
    // Predicated region
    $region22: #{tpu_custom_call.1} parent=1 // pred_check
      _
    $region23: #{tpu_custom_call.1} parent=1 // pred_check_branch
      %26 = sbr.rel (0) target = $region25
    $region24: #{tpu_custom_call.1} parent=1 // pred_region
      _
    $region25: #{tpu_custom_call.1} parent=1 // pred_fallthru
      _
    // Predicated region
    $region26: #{tpu_custom_call.1} parent=1 // pred_check
      _
    $region27: #{tpu_custom_call.1} parent=1 // pred_check_branch
      %28 = sbr.rel (0) target = $region29
    $region28: #{tpu_custom_call.1} parent=1 // pred_region
      _
    $region29: #{tpu_custom_call.1} parent=1 // pred_fallthru
      _
    %v29 = vld [vmem:[%s0] sm:$0xff]
    %v30 = vld [vmem:[%s1] sm:$0xff]
    %v31 = vld [vmem:[%s1 + $0x8] sm:$0xff]
    %v32 = vld [vmem:[%s1 + $0x10] sm:$0xff]
    %v33 = vld [vmem:[%s1 + $0x18] sm:$0xff]
    %v34 = vld [vmem:[%s2] sm:$0x1]
    %v36 = vlaneseq
    %v37 = vshrl.u32 %v36, 7
    %v38 = vsub.s32 0, %v37
    %v39 = vrot.slane %v34, %v38
    %vm41 = vcmask 261120
    %v43 = vsel %vm41, %v29, 0
    %45 = vmatprep.subr.mxu0 0.0
    %46 = vmatpush1.msra.mxu0 %v30
    %47 = vmatprep.subr.mxu0 0.0
    %48 = vmatpush1.msra.mxu0 %v31
    %49 = vmatprep.subr.mxu0 0.0
    %50 = vmatpush1.msra.mxu0 %v32
    %51 = vmatprep.subr.mxu0 0.0
    %52 = vmatpush1.msra.mxu0 %v33
    %53 = vmatprep.subr.mxu0 0.0
    %54 = vmatpush1.msra.mxu0 0.0
    %55 = vmatprep.subr.mxu0 0.0
    %56 = vmatpush1.msra.mxu0 0.0
    %57 = vmatprep.subr.mxu0 0.0
    %58 = vmatpush1.msra.mxu0 0.0
    %59 = vmatprep.subr.mxu0 0.0
    %60 = vmatpush1.msra.mxu0 0.0
    %61 = vmatprep.subr.mxu0 0.0
    %62 = vmatpush1.msra.mxu0 0.0
    %63 = vmatprep.subr.mxu0 0.0
    %64 = vmatpush1.msra.mxu0 0.0
    %65 = vmatprep.subr.mxu0 0.0
    %66 = vmatpush1.msra.mxu0 0.0
    %67 = vmatprep.subr.mxu0 0.0
    %68 = vmatpush1.msra.mxu0 0.0
    %69 = vmatprep.subr.mxu0 0.0
    %70 = vmatpush1.msra.mxu0 0.0
    %71 = vmatprep.subr.mxu0 0.0
    %72 = vmatpush1.msra.mxu0 0.0
    %73 = vmatprep.subr.mxu0 0.0
    %74 = vmatpush1.msra.mxu0 0.0
    %75 = vmatprep.subr.mxu0 0.0
    %76 = vmatpush1.msra.mxu0 0.0
    %77 = vmatprep.subr.mxu0 0.0
    %78 = vmatpush1.msra.mxu0 0.0
    %79 = vmatprep.subr.mxu0 0.0
    %80 = vmatpush1.msra.mxu0 0.0
    %81 = vmatprep.subr.mxu0 0.0
    %82 = vmatpush1.msra.mxu0 0.0
    %83 = vmatprep.subr.mxu0 0.0
    %84 = vmatpush1.msra.mxu0 0.0
    %85 = vmatprep.subr.mxu0 0.0
    %86 = vmatpush1.msra.mxu0 0.0
    %87 = vmatprep.subr.mxu0 0.0
    %88 = vmatpush1.msra.mxu0 0.0
    %89 = vmatprep.subr.mxu0 0.0
    %90 = vmatpush1.msra.mxu0 0.0
    %91 = vmatprep.subr.mxu0 0.0
    %92 = vmatpush1.msra.mxu0 0.0
    %93 = vmatprep.subr.mxu0 0.0
    %94 = vmatpush1.msra.mxu0 0.0
    %95 = vmatprep.subr.mxu0 0.0
    %96 = vmatpush1.msra.mxu0 0.0
    %97 = vmatprep.subr.mxu0 0.0
    %98 = vmatpush1.msra.mxu0 0.0
    %99 = vmatprep.subr.mxu0 0.0
    %100 = vmatpush1.msra.mxu0 0.0
    %101 = vmatprep.subr.mxu0 0.0
    %102 = vmatpush1.msra.mxu0 0.0
    %103 = vmatprep.subr.mxu0 0.0
    %104 = vmatpush1.msra.mxu0 0.0
    %105 = vmatprep.subr.mxu0 0.0
    %106 = vmatpush1.msra.mxu0 0.0
    %107 = vmatprep.subr.mxu0 0.0
    %108 = vmatpush1.msra.mxu0 0.0
    %109 = vmatprep.mubr.f32.mxu0 0.0
    %110 = vmatmul.mubr.f32.gmra.mrb[0].mxu0 %v43
    %v111 = vpop.f32.mrb[0].mxu0
    %v112 = vadd.f32 %v39, %v111
    %v113 = vpop.f32.mrb[0].mxu0
    %114 = vdwg.mxu0
    %v115 = vmax.f32 %v112, 0.0
    %v116 = vld [vmem:[%s3] sm:$0xff]
    %v117 = vld [vmem:[%s3 + $0x8] sm:$0xff]
    %v118 = vld [vmem:[%s3 + $0x10] sm:$0xff]
    %v119 = vld [vmem:[%s3 + $0x18] sm:$0xff]
    %v120 = vld [vmem:[%s3 + $0x20] sm:$0xff]
    %v121 = vld [vmem:[%s3 + $0x28] sm:$0xff]
    %v122 = vld [vmem:[%s3 + $0x30] sm:$0xff]
    %v123 = vld [vmem:[%s3 + $0x38] sm:$0xff]
    %v124 = vld [vmem:[%s4] sm:$0x1]
    %v126 = vlaneseq
    %v127 = vshrl.u32 %v126, 7
    %v128 = vsub.s32 0, %v127
    %v129 = vrot.slane %v124, %v128
    %vm131 = vcmask 523264
    %v133 = vsel %vm131, %v115, 0
    %135 = vmatprep.subr.mxu0 0.0
    %136 = vmatpush1.msra.mxu0 %v116
    %137 = vmatprep.subr.mxu0 0.0
    %138 = vmatpush1.msra.mxu0 %v117
    %139 = vmatprep.subr.mxu0 0.0
    %140 = vmatpush1.msra.mxu0 %v118
    %141 = vmatprep.subr.mxu0 0.0
    %142 = vmatpush1.msra.mxu0 %v119
    %143 = vmatprep.subr.mxu0 0.0
    %144 = vmatpush1.msra.mxu0 %v120
    %145 = vmatprep.subr.mxu0 0.0
    %146 = vmatpush1.msra.mxu0 %v121
    %147 = vmatprep.subr.mxu0 0.0
    %148 = vmatpush1.msra.mxu0 %v122
    %149 = vmatprep.subr.mxu0 0.0
    %150 = vmatpush1.msra.mxu0 %v123
    %151 = vmatprep.subr.mxu0 0.0
    %152 = vmatpush1.msra.mxu0 0.0
    %153 = vmatprep.subr.mxu0 0.0
    %154 = vmatpush1.msra.mxu0 0.0
    %155 = vmatprep.subr.mxu0 0.0
    %156 = vmatpush1.msra.mxu0 0.0
    %157 = vmatprep.subr.mxu0 0.0
    %158 = vmatpush1.msra.mxu0 0.0
    %159 = vmatprep.subr.mxu0 0.0
    %160 = vmatpush1.msra.mxu0 0.0
    %161 = vmatprep.subr.mxu0 0.0
    %162 = vmatpush1.msra.mxu0 0.0
    %163 = vmatprep.subr.mxu0 0.0
    %164 = vmatpush1.msra.mxu0 0.0
    %165 = vmatprep.subr.mxu0 0.0
    %166 = vmatpush1.msra.mxu0 0.0
    %167 = vmatprep.subr.mxu0 0.0
    %168 = vmatpush1.msra.mxu0 0.0
    %169 = vmatprep.subr.mxu0 0.0
    %170 = vmatpush1.msra.mxu0 0.0
    %171 = vmatprep.subr.mxu0 0.0
    %172 = vmatpush1.msra.mxu0 0.0
    %173 = vmatprep.subr.mxu0 0.0
    %174 = vmatpush1.msra.mxu0 0.0
    %175 = vmatprep.subr.mxu0 0.0
    %176 = vmatpush1.msra.mxu0 0.0
    %177 = vmatprep.subr.mxu0 0.0
    %178 = vmatpush1.msra.mxu0 0.0
    %179 = vmatprep.subr.mxu0 0.0
    %180 = vmatpush1.msra.mxu0 0.0
    %181 = vmatprep.subr.mxu0 0.0
    %182 = vmatpush1.msra.mxu0 0.0
    %183 = vmatprep.subr.mxu0 0.0
    %184 = vmatpush1.msra.mxu0 0.0
    %185 = vmatprep.subr.mxu0 0.0
    %186 = vmatpush1.msra.mxu0 0.0
    %187 = vmatprep.subr.mxu0 0.0
    %188 = vmatpush1.msra.mxu0 0.0
    %189 = vmatprep.subr.mxu0 0.0
    %190 = vmatpush1.msra.mxu0 0.0
    %191 = vmatprep.subr.mxu0 0.0
    %192 = vmatpush1.msra.mxu0 0.0
    %193 = vmatprep.subr.mxu0 0.0
    %194 = vmatpush1.msra.mxu0 0.0
    %195 = vmatprep.subr.mxu0 0.0
    %196 = vmatpush1.msra.mxu0 0.0
    %197 = vmatprep.subr.mxu0 0.0
    %198 = vmatpush1.msra.mxu0 0.0
    %199 = vmatprep.mubr.f32.mxu0 0.0
    %200 = vmatmul.mubr.f32.gmra.mrb[0].mxu0 %v133
    %v201 = vpop.f32.mrb[0].mxu0
    %v202 = vadd.f32 %v129, %v201
    %v203 = vpop.f32.mrb[0].mxu0
    %204 = vdwg.mxu0
    %v205 = vmax.f32 %v202, 0.0
    %v206 = vld [vmem:[%s5] sm:$0x1]
    %v208 = vlaneseq
    %v209 = vshrl.u32 %v208, 7
    %v210 = vsub.s32 0, %v209
    %v211 = vrot.slane %v206, %v210
    %v213 = vmul.f32 %v205, %v211
    %214 = vxpose.xlu0.b32.start [1/16] %v213, 128
    %215 = vxpose.xlu0.b32.cont [2/16] 0.0, 128
    %216 = vxpose.xlu0.b32.cont [3/16] 0.0, 128
    %217 = vxpose.xlu0.b32.cont [4/16] 0.0, 128
    %218 = vxpose.xlu0.b32.cont [5/16] 0.0, 128
    %219 = vxpose.xlu0.b32.cont [6/16] 0.0, 128
    %220 = vxpose.xlu0.b32.cont [7/16] 0.0, 128
    %221 = vxpose.xlu0.b32.cont [8/16] 0.0, 128
    %222 = vxpose.xlu0.b32.cont [9/16] 0.0, 128
    %223 = vxpose.xlu0.b32.cont [10/16] 0.0, 128
    %224 = vxpose.xlu0.b32.cont [11/16] 0.0, 128
    %225 = vxpose.xlu0.b32.cont [12/16] 0.0, 128
    %226 = vxpose.xlu0.b32.cont [13/16] 0.0, 128
    %227 = vxpose.xlu0.b32.cont [14/16] 0.0, 128
    %228 = vxpose.xlu0.b32.cont [15/16] 0.0, 128
    %229 = vxpose.xlu0.b32.end [16/16] 0.0, 128
    %v230 = vpop.trf.xlu0
    %v231 = vpop.trf.xlu0
    %v232 = vpop.trf.xlu0
    %v233 = vpop.trf.xlu0
    %v234 = vpop.trf.xlu0
    %v235 = vpop.trf.xlu0
    %v236 = vpop.trf.xlu0
    %v237 = vpop.trf.xlu0
    %v238 = vpop.trf.xlu0
    %v239 = vpop.trf.xlu0
    %v240 = vpop.trf.xlu0
    %v241 = vpop.trf.xlu0
    %v242 = vpop.trf.xlu0
    %v243 = vpop.trf.xlu0
    %v244 = vpop.trf.xlu0
    %v245 = vpop.trf.xlu0
    %vm246 = vcmask 64512
    %v247 = vsel %vm246, %v230, 0.0
    %v248 = vsel %vm246, %v231, 0.0
    %v249 = vadd.f32 %v247, %v248
    %v250 = vsel %vm246, %v232, 0.0
    %v251 = vadd.f32 %v249, %v250
    %v252 = vsel %vm246, %v233, 0.0
    %v253 = vadd.f32 %v251, %v252
    %v254 = vrot.slane %v253, 4
    %v255 = vadd.f32 %v253, %v254
    %v256 = vrot.slane %v255, 2
    %v257 = vadd.f32 %v255, %v256
    %v258 = vrot.slane %v257, 1
    %v259 = vadd.f32 %v257, %v258
    %v260 = vld [vmem:[#allocation2] sm:$0x1]
    %262 = vset.pattern.permute.xlu0 0
    %263 = vperm.xlu0 %262, %v260
    %v264 = vpop.permute.xlu0 %263
    %v266 = vlaneseq
    %v267 = vshrl.u32 %v266, 7
    %v268 = vsub.s32 0, %v267
    %v269 = vrot.slane %v264, %v268
    %v270 = vadd.f32 %v259, %v269
    %vm271 = vcmask 57344
    %272 = vst.msk [vmem:[#allocation3] sm:$0x1] %vm271, %v270
    // Predicated region
    $region30: #{tpu_custom_call.1} parent=1 // pred_check
      _
    $region31: #{tpu_custom_call.1} parent=1 // pred_check_branch
      %274 = sbr.rel (0) target = $region33
    $region32: #{tpu_custom_call.1} parent=1 // pred_region
      %s276 = ssub.s32 16, 16
      %277 = vsyncadd [#allocation4], %s276
      %s279 = sshll.u32 [#allocation3], 4
      %s280 = int_to_ptr.vmem [resolvable:$true] %s279
      %282 = dma.vmem_to_hbm [thread:$0]  %s280, 16, %s7, [#allocation4]
    $region33: #{tpu_custom_call.1} parent=1 // pred_fallthru
      _
    // Predicated region
    $region34: #{tpu_custom_call.1} parent=1 // pred_check
      _
    $region35: #{tpu_custom_call.1} parent=1 // pred_check_branch
      %284 = sbr.rel (0) target = $region37
    $region36: #{tpu_custom_call.1} parent=1 // pred_region
      %285 = dma.done [#allocation4], 16
    $region37: #{tpu_custom_call.1} parent=1 // pred_fallthru
      _
    %286 = vsyncpa [#allocation4], 1

</llo_original>
